<compile_context>
chip_gen: v6e
topology: v6e:2x2x1
jax: 0.10.0
libtpu: 0.0.40
codegen_flags: <defaults>
</compile_context>

<pallas_src>
import functools

import jax
import jax.numpy as jnp
from jax.experimental import pallas as pl
from jax.experimental.pallas import tpu as pltpu


STATE_SIZE = 24
ACTION_SIZE = 2
NUM_AGENTS = 2
FC1_UNITS = 128
FC2_UNITS = 64
BN_EPS = 1e-5

S_IN = STATE_SIZE * NUM_AGENTS        # 48
A_IN = ACTION_SIZE * NUM_AGENTS       # 4
CAT_IN = FC1_UNITS + A_IN             # 132

_VMEM_LIMIT = 32 * 1024 * 1024        # safe on v5e/v6e (128 MiB) and v7x (64 MiB)


# ---------------------------------------------------------------------------
# Phase 1: h1 = relu(state @ W1 + b1); accumulate per-feature sum / sum-of-squares
# for both segments (h1 and action) over the whole batch.
# ---------------------------------------------------------------------------
def _fc1_stats_kernel(state_ref, action_ref, w1_ref, b1_ref,
                      h1_ref, sum_h1_ref, sumsq_h1_ref, sum_act_ref, sumsq_act_ref):
    @pl.when(pl.program_id(0) == 0)
    def _init():
        sum_h1_ref[...] = jnp.zeros_like(sum_h1_ref)
        sumsq_h1_ref[...] = jnp.zeros_like(sumsq_h1_ref)
        sum_act_ref[...] = jnp.zeros_like(sum_act_ref)
        sumsq_act_ref[...] = jnp.zeros_like(sumsq_act_ref)

    # fc1 + relu (MXU matmul, K=48, f32 accumulation)
    h1 = jnp.dot(state_ref[...], w1_ref[...],
                 preferred_element_type=jnp.float32) + b1_ref[...]
    h1 = jnp.maximum(h1, 0.0)                       # (TB, 128)
    h1_ref[...] = h1

    act = action_ref[...]                           # (TB, 4)

    # one-pass stats: sum and sum-of-squares together (single sublane-reduce phase)
    sum_h1_ref[...] += jnp.sum(h1, axis=0, keepdims=True)
    sumsq_h1_ref[...] += jnp.sum(h1 * h1, axis=0, keepdims=True)
    sum_act_ref[...] += jnp.sum(act, axis=0, keepdims=True)
    sumsq_act_ref[...] += jnp.sum(act * act, axis=0, keepdims=True)


# ---------------------------------------------------------------------------
# Phase 2: fold BN into per-segment scale/shift, fc2 (K=128 MXU + K=4 dot),
# fc3 as VPU multiply + lane reduce, sigmoid.
# ---------------------------------------------------------------------------
def _bn_fc2_fc3_kernel(h1_ref, action_ref,
                       sum_h1_ref, sumsq_h1_ref, sum_act_ref, sumsq_act_ref,
                       gamma_h1_ref, beta_h1_ref, gamma_act_ref, beta_act_ref,
                       w2a_ref, w2b_ref, b2_ref, w3_ref, b3_ref,
                       out_ref, *, inv_batch):
    # BN folded into scale/shift per segment (tiny (1,128)/(1,4) vectors).
    mean_h1 = sum_h1_ref[...] * inv_batch
    var_h1 = sumsq_h1_ref[...] * inv_batch - mean_h1 * mean_h1
    scale_h1 = gamma_h1_ref[...] * jax.lax.rsqrt(var_h1 + BN_EPS)
    shift_h1 = beta_h1_ref[...] - mean_h1 * scale_h1

    mean_act = sum_act_ref[...] * inv_batch
    var_act = sumsq_act_ref[...] * inv_batch - mean_act * mean_act
    scale_act = gamma_act_ref[...] * jax.lax.rsqrt(var_act + BN_EPS)
    shift_act = beta_act_ref[...] - mean_act * scale_act

    bn_h1 = h1_ref[...] * scale_h1 + shift_h1        # (TB, 128)
    bn_act = action_ref[...] * scale_act + shift_act  # (TB, 4)

    # fc2: split into K=128 (MXU-native) and K=4 pieces; no 132-wide relayout.
    h2 = jnp.dot(bn_h1, w2a_ref[...], preferred_element_type=jnp.float32)
    h2 = h2 + jnp.dot(bn_act, w2b_ref[...], preferred_element_type=jnp.float32)
    h2 = jnp.maximum(h2 + b2_ref[...], 0.0)          # (TB, 64)

    # fc3: N=1 output -> VPU multiply + single lane reduce instead of MXU matmul.
    logits = jnp.sum(h2 * w3_ref[...], axis=1, keepdims=True) + b3_ref[...]
    out_ref[...] = jax.nn.sigmoid(logits)            # (TB, 1)


def _pick_tile_b(batch, max_tile=512):
    """Largest multiple-of-8 divisor of `batch` capped at max_tile; else whole batch."""
    if batch % 8 != 0:
        return batch
    tile = min(max_tile, batch)
    tile -= tile % 8
    while batch % tile != 0:
        tile -= 8
    return max(tile, 8)


def critic_forward(state, action, params, *, max_tile_b=512):
    """Full Critic forward as two pipelined Pallas kernels over a batch grid."""
    batch = state.shape[0]
    tile_b = _pick_tile_b(batch, max_tile_b)
    grid = (batch // tile_b,)

    # ---- Phase 1: fc1 + ReLU + full-batch BN statistics ('arbitrary' = reduction)
    h1, sum_h1, sumsq_h1, sum_act, sumsq_act = pl.pallas_call(
        _fc1_stats_kernel,
        grid=grid,
        in_specs=[
            pl.BlockSpec((tile_b, S_IN), lambda i: (i, 0)),
            pl.BlockSpec((tile_b, A_IN), lambda i: (i, 0)),
            pl.BlockSpec((S_IN, FC1_UNITS), lambda i: (0, 0)),
            pl.BlockSpec((1, FC1_UNITS), lambda i: (0, 0)),
        ],
        out_specs=(
            pl.BlockSpec((tile_b, FC1_UNITS), lambda i: (i, 0)),
            pl.BlockSpec((1, FC1_UNITS), lambda i: (0, 0)),
            pl.BlockSpec((1, FC1_UNITS), lambda i: (0, 0)),
            pl.BlockSpec((1, A_IN), lambda i: (0, 0)),
            pl.BlockSpec((1, A_IN), lambda i: (0, 0)),
        ),
        out_shape=(
            jax.ShapeDtypeStruct((batch, FC1_UNITS), jnp.float32),
            jax.ShapeDtypeStruct((1, FC1_UNITS), jnp.float32),
            jax.ShapeDtypeStruct((1, FC1_UNITS), jnp.float32),
            jax.ShapeDtypeStruct((1, A_IN), jnp.float32),
            jax.ShapeDtypeStruct((1, A_IN), jnp.float32),
        ),
        compiler_params=pltpu.CompilerParams(
            dimension_semantics=("arbitrary",),
            vmem_limit_bytes=_VMEM_LIMIT),
    )(state, action, params["w1"], params["b1"])

    # Static splits of W2 / gamma / beta (free slices in the wrapper).
    w2a = params["w2"][:FC1_UNITS, :]        # (128, 64)
    w2b = params["w2"][FC1_UNITS:, :]        # (4, 64)
    gamma_h1 = params["gamma"][:, :FC1_UNITS]
    gamma_act = params["gamma"][:, FC1_UNITS:]
    beta_h1 = params["beta"][:, :FC1_UNITS]
    beta_act = params["beta"][:, FC1_UNITS:]
    w3_row = jnp.reshape(params["w3"], (1, FC2_UNITS))   # (1, 64)

    kernel2 = functools.partial(_bn_fc2_fc3_kernel, inv_batch=1.0 / batch)

    # ---- Phase 2: normalize + fc2 + fc3 ('parallel' -> megacore sharding on v7x)
    # TODO(synk): for very large B on v6e, cast bn_h1/w2a to bf16 for the MXU dot
    # (kept f32 here so numerics match the f32 reference exactly).
    out = pl.pallas_call(
        kernel2,
        grid=grid,
        in_specs=[
            pl.BlockSpec((tile_b, FC1_UNITS), lambda i: (i, 0)),   # h1
            pl.BlockSpec((tile_b, A_IN), lambda i: (i, 0)),        # action
            pl.BlockSpec((1, FC1_UNITS), lambda i: (0, 0)),        # sum_h1
            pl.BlockSpec((1, FC1_UNITS), lambda i: (0, 0)),        # sumsq_h1
            pl.BlockSpec((1, A_IN), lambda i: (0, 0)),             # sum_act
            pl.BlockSpec((1, A_IN), lambda i: (0, 0)),             # sumsq_act
            pl.BlockSpec((1, FC1_UNITS), lambda i: (0, 0)),        # gamma_h1
            pl.BlockSpec((1, FC1_UNITS), lambda i: (0, 0)),        # beta_h1
            pl.BlockSpec((1, A_IN), lambda i: (0, 0)),             # gamma_act
            pl.BlockSpec((1, A_IN), lambda i: (0, 0)),             # beta_act
            pl.BlockSpec((FC1_UNITS, FC2_UNITS), lambda i: (0, 0)),  # w2a
            pl.BlockSpec((A_IN, FC2_UNITS), lambda i: (0, 0)),       # w2b
            pl.BlockSpec((1, FC2_UNITS), lambda i: (0, 0)),          # b2
            pl.BlockSpec((1, FC2_UNITS), lambda i: (0, 0)),          # w3 row
            pl.BlockSpec((1, 1), lambda i: (0, 0)),                  # b3
        ],
        out_specs=pl.BlockSpec((tile_b, 1), lambda i: (i, 0)),
        out_shape=jax.ShapeDtypeStruct((batch, 1), jnp.float32),
        compiler_params=pltpu.CompilerParams(
            dimension_semantics=("parallel",),
            vmem_limit_bytes=_VMEM_LIMIT),
    )(h1, action, sum_h1, sumsq_h1, sum_act, sumsq_act,
      gamma_h1, beta_h1, gamma_act, beta_act,
      w2a, w2b, params["b2"], w3_row, params["b3"])
    return out


def init_params(key):
    """Parameter init mirroring the PyTorch module's shapes.

    fc{1,2,3}.weight ~ U(-0.003, 0.003) (reset_params); biases keep the default
    nn.Linear bound 1/sqrt(fan_in); BatchNorm affine: gamma=1, beta=0.
    Linear weights stored transposed: (in_features, out_features).
    """
    k1, k2, k3, k4, k5, k6 = jax.random.split(key, 6)

    def u(k, shape, bound):
        return jax.random.uniform(k, shape, jnp.float32, -bound, bound)

    return {
        "w1": u(k1, (S_IN, FC1_UNITS), 0.003),
        "b1": u(k2, (1, FC1_UNITS), 1.0 / (S_IN ** 0.5)),
        "gamma": jnp.ones((1, CAT_IN), jnp.float32),
        "beta": jnp.zeros((1, CAT_IN), jnp.float32),
        "w2": u(k3, (CAT_IN, FC2_UNITS), 0.003),
        "b2": u(k4, (1, FC2_UNITS), 1.0 / (CAT_IN ** 0.5)),
        "w3": u(k5, (FC2_UNITS, 1), 0.003),
        "b3": u(k6, (1, 1), 1.0 / (FC2_UNITS ** 0.5)),
    }


def reference_forward(state, action, p):
    """Pure-JAX reference (concat form, two-pass BN) for correctness check."""
    h1 = jnp.maximum(state @ p["w1"] + p["b1"], 0.0)
    x = jnp.concatenate([h1, action], axis=1)
    mean = jnp.mean(x, axis=0, keepdims=True)
    var = jnp.mean((x - mean) ** 2, axis=0, keepdims=True)
    x = (x - mean) / jnp.sqrt(var + BN_EPS) * p["gamma"] + p["beta"]
    h2 = jnp.maximum(x @ p["w2"] + p["b2"], 0.0)
    return jax.nn.sigmoid(h2 @ p["w3"] + p["b3"])


if __name__ == "__main__":
    key = jax.random.PRNGKey(0)
    kp, ks, ka, ks2, ka2 = jax.random.split(key, 5)

    params = init_params(kp)

    # Small batch, single grid step.
    B = 8
    state = jax.random.normal(ks, (B, S_IN), jnp.float32)
    action = jax.random.normal(ka, (B, A_IN), jnp.float32)
    out = jax.block_until_ready(critic_forward(state, action, params))
    ref = reference_forward(state, action, params)
    assert out.shape == (B, 1)
    assert jnp.allclose(out, ref, atol=1e-5, rtol=1e-5), "mismatch vs reference (B=8)"

    # Larger batch with tile_b=8 -> grid=(4,): exercises the stats-accumulation
    # ('arbitrary') pass and the 'parallel' normalize/fc pass across tiles.
    B2 = 32
    state2 = jax.random.normal(ks2, (B2, S_IN), jnp.float32)
    action2 = jax.random.normal(ka2, (B2, A_IN), jnp.float32)
    out2 = jax.block_until_ready(critic_forward(state2, action2, params, max_tile_b=8))
    ref2 = reference_forward(state2, action2, params)
    assert out2.shape == (B2, 1)
    assert jnp.allclose(out2, ref2, atol=1e-5, rtol=1e-5), "mismatch vs reference (B=32)"

    print("KERNEL_OK")
</pallas_src>

<mosaic_0001>
module attributes {stable_mosaic.version = 11 : i64} {
  func.func @_fc1_stats_kernel(%arg0: i32, %arg1: memref<8x48xf32, #tpu.memory_space<vmem>>, %arg2: memref<8x4xf32, #tpu.memory_space<vmem>>, %arg3: memref<48x128xf32, #tpu.memory_space<vmem>>, %arg4: memref<1x128xf32, #tpu.memory_space<vmem>>, %arg5: memref<8x128xf32, #tpu.memory_space<vmem>>, %arg6: memref<1x128xf32, #tpu.memory_space<vmem>>, %arg7: memref<1x128xf32, #tpu.memory_space<vmem>>, %arg8: memref<1x4xf32, #tpu.memory_space<vmem>>, %arg9: memref<1x4xf32, #tpu.memory_space<vmem>>) attributes {dimension_semantics = [#tpu.dimension_semantics<arbitrary>], iteration_bounds = array<i64: 1>, scalar_prefetch = 0 : i64, scratch_operands = 0 : i64, tpu.core_type = #tpu.core_type<tc>, window_params = [{transform_indices = @transform_0, window_bounds = array<i64: 8, 48>}, {transform_indices = @transform_1, window_bounds = array<i64: 8, 4>}, {pipeline_mode = #tpu.pipeline_mode<synchronous>, transform_indices = @transform_2, window_bounds = array<i64: 48, 128>}, {pipeline_mode = #tpu.pipeline_mode<synchronous>, transform_indices = @transform_3, window_bounds = array<i64: 1, 128>}, {transform_indices = @transform_4, window_bounds = array<i64: 8, 128>}, {pipeline_mode = #tpu.pipeline_mode<synchronous>, transform_indices = @transform_5, window_bounds = array<i64: 1, 128>}, {pipeline_mode = #tpu.pipeline_mode<synchronous>, transform_indices = @transform_6, window_bounds = array<i64: 1, 128>}, {pipeline_mode = #tpu.pipeline_mode<synchronous>, transform_indices = @transform_7, window_bounds = array<i64: 1, 4>}, {pipeline_mode = #tpu.pipeline_mode<synchronous>, transform_indices = @transform_8, window_bounds = array<i64: 1, 4>}]} {
    %c0_i32 = arith.constant 0 : i32
    %0 = arith.cmpi eq, %arg0, %c0_i32 : i32
    %1 = arith.extui %0 : i1 to i32
    %c0_i32_0 = arith.constant 0 : i32
    %2 = arith.cmpi ne, %1, %c0_i32_0 : i32
    scf.if %2 {
      %cst_31 = arith.constant 0.000000e+00 : f32
      %35 = vector.broadcast %cst_31 : f32 to vector<1x128xf32>
      %c0_32 = arith.constant 0 : index
      %c0_33 = arith.constant 0 : index
      %36 = vector.load %arg6[%c0_32, %c0_33] : memref<1x128xf32, #tpu.memory_space<vmem>>, vector<1x128xf32>
      tpu.vector_store %arg6[%c0_32, %c0_33], %35 {strides = array<i32>} : memref<1x128xf32, #tpu.memory_space<vmem>>, vector<1x128xf32>,
      %cst_34 = arith.constant 0.000000e+00 : f32
      %37 = vector.broadcast %cst_34 : f32 to vector<1x128xf32>
      %c0_35 = arith.constant 0 : index
      %c0_36 = arith.constant 0 : index
      %38 = vector.load %arg7[%c0_35, %c0_36] : memref<1x128xf32, #tpu.memory_space<vmem>>, vector<1x128xf32>
      tpu.vector_store %arg7[%c0_35, %c0_36], %37 {strides = array<i32>} : memref<1x128xf32, #tpu.memory_space<vmem>>, vector<1x128xf32>,
      %cst_37 = arith.constant 0.000000e+00 : f32
      %39 = vector.broadcast %cst_37 : f32 to vector<1x4xf32>
      %c0_38 = arith.constant 0 : index
      %c0_39 = arith.constant 0 : index
      %40 = vector.load %arg8[%c0_38, %c0_39] : memref<1x4xf32, #tpu.memory_space<vmem>>, vector<1x4xf32>
      tpu.vector_store %arg8[%c0_38, %c0_39], %39 {strides = array<i32>} : memref<1x4xf32, #tpu.memory_space<vmem>>, vector<1x4xf32>,
      %cst_40 = arith.constant 0.000000e+00 : f32
      %41 = vector.broadcast %cst_40 : f32 to vector<1x4xf32>
      %c0_41 = arith.constant 0 : index
      %c0_42 = arith.constant 0 : index
      %42 = vector.load %arg9[%c0_41, %c0_42] : memref<1x4xf32, #tpu.memory_space<vmem>>, vector<1x4xf32>
      tpu.vector_store %arg9[%c0_41, %c0_42], %41 {strides = array<i32>} : memref<1x4xf32, #tpu.memory_space<vmem>>, vector<1x4xf32>,
    } else {
    }
    %c0 = arith.constant 0 : index
    %c0_1 = arith.constant 0 : index
    %3 = vector.load %arg1[%c0, %c0_1] : memref<8x48xf32, #tpu.memory_space<vmem>>, vector<8x48xf32>
    %c0_2 = arith.constant 0 : index
    %c0_3 = arith.constant 0 : index
    %4 = vector.load %arg3[%c0_2, %c0_3] : memref<48x128xf32, #tpu.memory_space<vmem>>, vector<48x128xf32>
    %cst = arith.constant dense<0.000000e+00> : vector<8x128xf32>
    %5 = tpu.matmul %3, %4, %cst {dimension_numbers = #tpu.dot_dimension_numbers<[1], [0], [0], [1], [0, 0, 1, 1], [], []>} : vector<8x48xf32>, vector<48x128xf32>, vector<8x128xf32> -> vector<8x128xf32>
    %c0_4 = arith.constant 0 : index
    %c0_5 = arith.constant 0 : index
    %6 = vector.load %arg4[%c0_4, %c0_5] : memref<1x128xf32, #tpu.memory_space<vmem>>, vector<1x128xf32>
    %7 = vector.broadcast %6 : vector<1x128xf32> to vector<8x128xf32>
    %8 = arith.addf %5, %7 : vector<8x128xf32>
    %cst_6 = arith.constant 0.000000e+00 : f32
    %9 = vector.broadcast %cst_6 : f32 to vector<8x128xf32>
    %10 = arith.maximumf %8, %9 : vector<8x128xf32>
    %c0_7 = arith.constant 0 : index
    %c0_8 = arith.constant 0 : index
    %11 = vector.load %arg5[%c0_7, %c0_8] : memref<8x128xf32, #tpu.memory_space<vmem>>, vector<8x128xf32>
    tpu.vector_store %arg5[%c0_7, %c0_8], %10 {strides = array<i32>} : memref<8x128xf32, #tpu.memory_space<vmem>>, vector<8x128xf32>,
    %c0_9 = arith.constant 0 : index
    %c0_10 = arith.constant 0 : index
    %12 = vector.load %arg2[%c0_9, %c0_10] : memref<8x4xf32, #tpu.memory_space<vmem>>, vector<8x4xf32>
    %c0_11 = arith.constant 0 : index
    %c0_12 = arith.constant 0 : index
    %13 = vector.load %arg6[%c0_11, %c0_12] : memref<1x128xf32, #tpu.memory_space<vmem>>, vector<1x128xf32>
    %cst_13 = arith.constant dense<0.000000e+00> : vector<128xf32>
    %14 = vector.multi_reduction <add>, %10, %cst_13 [0] : vector<8x128xf32> to vector<128xf32>
    %15 = vector.shape_cast %14 : vector<128xf32> to vector<1x128xf32>
    %16 = arith.addf %13, %15 : vector<1x128xf32>
    %c0_14 = arith.constant 0 : index
    %c0_15 = arith.constant 0 : index
    %17 = vector.load %arg6[%c0_14, %c0_15] : memref<1x128xf32, #tpu.memory_space<vmem>>, vector<1x128xf32>
    tpu.vector_store %arg6[%c0_14, %c0_15], %16 {strides = array<i32>} : memref<1x128xf32, #tpu.memory_space<vmem>>, vector<1x128xf32>,
    %c0_16 = arith.constant 0 : index
    %c0_17 = arith.constant 0 : index
    %18 = vector.load %arg7[%c0_16, %c0_17] : memref<1x128xf32, #tpu.memory_space<vmem>>, vector<1x128xf32>
    %19 = arith.mulf %10, %10 : vector<8x128xf32>
    %cst_18 = arith.constant dense<0.000000e+00> : vector<128xf32>
    %20 = vector.multi_reduction <add>, %19, %cst_18 [0] : vector<8x128xf32> to vector<128xf32>
    %21 = vector.shape_cast %20 : vector<128xf32> to vector<1x128xf32>
    %22 = arith.addf %18, %21 : vector<1x128xf32>
    %c0_19 = arith.constant 0 : index
    %c0_20 = arith.constant 0 : index
    %23 = vector.load %arg7[%c0_19, %c0_20] : memref<1x128xf32, #tpu.memory_space<vmem>>, vector<1x128xf32>
    tpu.vector_store %arg7[%c0_19, %c0_20], %22 {strides = array<i32>} : memref<1x128xf32, #tpu.memory_space<vmem>>, vector<1x128xf32>,
    %c0_21 = arith.constant 0 : index
    %c0_22 = arith.constant 0 : index
    %24 = vector.load %arg8[%c0_21, %c0_22] : memref<1x4xf32, #tpu.memory_space<vmem>>, vector<1x4xf32>
    %cst_23 = arith.constant dense<0.000000e+00> : vector<4xf32>
    %25 = vector.multi_reduction <add>, %12, %cst_23 [0] : vector<8x4xf32> to vector<4xf32>
    %26 = vector.shape_cast %25 : vector<4xf32> to vector<1x4xf32>
    %27 = arith.addf %24, %26 : vector<1x4xf32>
    %c0_24 = arith.constant 0 : index
    %c0_25 = arith.constant 0 : index
    %28 = vector.load %arg8[%c0_24, %c0_25] : memref<1x4xf32, #tpu.memory_space<vmem>>, vector<1x4xf32>
    tpu.vector_store %arg8[%c0_24, %c0_25], %27 {strides = array<i32>} : memref<1x4xf32, #tpu.memory_space<vmem>>, vector<1x4xf32>,
    %c0_26 = arith.constant 0 : index
    %c0_27 = arith.constant 0 : index
    %29 = vector.load %arg9[%c0_26, %c0_27] : memref<1x4xf32, #tpu.memory_space<vmem>>, vector<1x4xf32>
    %30 = arith.mulf %12, %12 : vector<8x4xf32>
    %cst_28 = arith.constant dense<0.000000e+00> : vector<4xf32>
    %31 = vector.multi_reduction <add>, %30, %cst_28 [0] : vector<8x4xf32> to vector<4xf32>
    %32 = vector.shape_cast %31 : vector<4xf32> to vector<1x4xf32>
    %33 = arith.addf %29, %32 : vector<1x4xf32>
    %c0_29 = arith.constant 0 : index
    %c0_30 = arith.constant 0 : index
    %34 = vector.load %arg9[%c0_29, %c0_30] : memref<1x4xf32, #tpu.memory_space<vmem>>, vector<1x4xf32>
    tpu.vector_store %arg9[%c0_29, %c0_30], %33 {strides = array<i32>} : memref<1x4xf32, #tpu.memory_space<vmem>>, vector<1x4xf32>,
    return
  }
  func.func @transform_0(%arg0: i32) -> (i32, i32) {
    %c0_i32 = arith.constant 0 : i32
    %c0_i32_0 = arith.constant 0 : i32
    return %arg0, %c0_i32 : i32, i32
  }
  func.func @transform_1(%arg0: i32) -> (i32, i32) {
    %c0_i32 = arith.constant 0 : i32
    %c0_i32_0 = arith.constant 0 : i32
    return %arg0, %c0_i32 : i32, i32
  }
  func.func @transform_2(%arg0: i32) -> (i32, i32) {
    %c0_i32 = arith.constant 0 : i32
    %c0_i32_0 = arith.constant 0 : i32
    %c0_i32_1 = arith.constant 0 : i32
    return %c0_i32, %c0_i32_0 : i32, i32
  }
  func.func @transform_3(%arg0: i32) -> (i32, i32) {
    %c0_i32 = arith.constant 0 : i32
    %c0_i32_0 = arith.constant 0 : i32
    %c0_i32_1 = arith.constant 0 : i32
    return %c0_i32, %c0_i32_0 : i32, i32
  }
  func.func @transform_4(%arg0: i32) -> (i32, i32) {
    %c0_i32 = arith.constant 0 : i32
    %c0_i32_0 = arith.constant 0 : i32
    return %arg0, %c0_i32 : i32, i32
  }
  func.func @transform_5(%arg0: i32) -> (i32, i32) {
    %c0_i32 = arith.constant 0 : i32
    %c0_i32_0 = arith.constant 0 : i32
    %c0_i32_1 = arith.constant 0 : i32
    return %c0_i32, %c0_i32_0 : i32, i32
  }
  func.func @transform_6(%arg0: i32) -> (i32, i32) {
    %c0_i32 = arith.constant 0 : i32
    %c0_i32_0 = arith.constant 0 : i32
    %c0_i32_1 = arith.constant 0 : i32
    return %c0_i32, %c0_i32_0 : i32, i32
  }
  func.func @transform_7(%arg0: i32) -> (i32, i32) {
    %c0_i32 = arith.constant 0 : i32
    %c0_i32_0 = arith.constant 0 : i32
    %c0_i32_1 = arith.constant 0 : i32
    return %c0_i32, %c0_i32_0 : i32, i32
  }
  func.func @transform_8(%arg0: i32) -> (i32, i32) {
    %c0_i32 = arith.constant 0 : i32
    %c0_i32_0 = arith.constant 0 : i32
    %c0_i32_1 = arith.constant 0 : i32
    return %c0_i32, %c0_i32_0 : i32, i32
  }
}

</mosaic_0001>

<llo_original>
// kernel: tpu_custom_call.1
$region0: #{tpu_custom_call.1}
  #allocation0 [shape = 'u32[]', space=smem, size = 0x4, offset = 0x4, fixed_abs, tag = 'smem constant byte address 0x4 - core index']
  #allocation1 [shape = 'u32[144,128]{1,0:T(1,128)}', space=vmem, size = 0x12000, scoped, tag = 'internal scratch']
  %s0 = inlined_call_operand.vmem [shape: f32[8,48], index: 0, kind: input, shape index: {}]
  %s1 = inlined_call_operand.vmem [shape: f32[8,4], index: 1, kind: input, shape index: {}]
  %s2 = inlined_call_operand.hbm [shape: f32[48,128], index: 2, kind: input, shape index: {}]
  %s3 = inlined_call_operand.vmem [shape: f32[1,128], index: 3, kind: input, shape index: {}]
  %s4 = inlined_call_operand.hbm [shape: f32[8,128], index: 4, kind: output, shape index: {0}]
  %s5 = inlined_call_operand.hbm [shape: f32[1,128], index: 5, kind: output, shape index: {1}]
  %s6 = inlined_call_operand.hbm [shape: f32[1,128], index: 6, kind: output, shape index: {2}]
  %s7 = inlined_call_operand.hbm [shape: f32[1,4], index: 7, kind: output, shape index: {3}]
  %s8 = inlined_call_operand.hbm [shape: f32[1,4], index: 8, kind: output, shape index: {4}]
  %9 = xla_tuple %s4, %s5, %s6, %s7, %s8
  %s10 = sld [smem:[#allocation0]]
  $region66: #{tpu_custom_call.1} parent=0
    _
  %s12 = ssub.s32 1, %s10
  %s13 = scalar_select 0, %s12, %s10
  $region1: #{tpu_custom_call.1} parent=0
    #allocation2 [shape = 'u8[24576]{0}', space=vmem, size = 0x6000, scoped, tag = 'input window, operand 2, single buffered']
    #allocation3 [shape = 's32[1]{0}', space=sflag, size = 0x4, scoped, tag = 'scoped memory for tpu_custom_call.1']
    #allocation4 [shape = 's32[1]{0}', space=sflag, size = 0x4, scoped, tag = 'scoped memory for tpu_custom_call.1']
    #allocation5 [shape = 'u8[4096]{0}', space=vmem, size = 0x1000, scoped, tag = 'output window, operand 0, single buffered']
    #allocation6 [shape = 'u8[512]{0}', space=vmem, size = 0x400, scoped, tag = 'output window, operand 1, single buffered']
    #allocation7 [shape = 's32[1]{0}', space=sflag, size = 0x4, scoped, tag = 'scoped memory for tpu_custom_call.1']
    #allocation8 [shape = 'u8[512]{0}', space=vmem, size = 0x400, scoped, tag = 'output window, operand 2, single buffered']
    #allocation9 [shape = 'u8[512]{0}', space=vmem, size = 0x400, scoped, tag = 'output window, operand 3, single buffered']
    #allocation10 [shape = 's32[1]{0}', space=sflag, size = 0x4, scoped, tag = 'scoped memory for tpu_custom_call.1']
    #allocation11 [shape = 'u8[512]{0}', space=vmem, size = 0x400, scoped, tag = 'output window, operand 4, single buffered']
    %14 = vsyncpa [#allocation3], 0
    %15 = vsyncpa [#allocation4], 0
    %16 = vsyncpa [#allocation7], 0
    %17 = vsyncpa [#allocation10], 0
    // Predicated region
    $region2: #{tpu_custom_call.1} parent=1 // pred_check
      _
    $region3: #{tpu_custom_call.1} parent=1 // pred_check_branch
      %19 = sbr.rel (0) target = $region5
    $region4: #{tpu_custom_call.1} parent=1 // pred_region
      _
    $region5: #{tpu_custom_call.1} parent=1 // pred_fallthru
      _
    // Predicated region
    $region6: #{tpu_custom_call.1} parent=1 // pred_check
      _
    $region7: #{tpu_custom_call.1} parent=1 // pred_check_branch
      %21 = sbr.rel (0) target = $region9
    $region8: #{tpu_custom_call.1} parent=1 // pred_region
      _
    $region9: #{tpu_custom_call.1} parent=1 // pred_fallthru
      _
    // Predicated region
    $region10: #{tpu_custom_call.1} parent=1 // pred_check
      _
    $region11: #{tpu_custom_call.1} parent=1 // pred_check_branch
      %23 = sbr.rel (0) target = $region13
    $region12: #{tpu_custom_call.1} parent=1 // pred_region
      %s25 = ssub.s32 768, 768
      %26 = vsyncadd [#allocation3], %s25
      %s27 = sshll.u32 [#allocation2], 4
      %s28 = int_to_ptr.vmem [resolvable:$true] %s27
      %33 = dma.hbm_to_vmem [thread:$0]  %s2, 768, %s28, [#allocation3], 128, 128, 8
    $region13: #{tpu_custom_call.1} parent=1 // pred_fallthru
      _
    // Predicated region
    $region14: #{tpu_custom_call.1} parent=1 // pred_check
      _
    $region15: #{tpu_custom_call.1} parent=1 // pred_check_branch
      %35 = sbr.rel (0) target = $region17
    $region16: #{tpu_custom_call.1} parent=1 // pred_region
      _
    $region17: #{tpu_custom_call.1} parent=1 // pred_fallthru
      _
    // Predicated region
    $region18: #{tpu_custom_call.1} parent=1 // pred_check
      _
    $region19: #{tpu_custom_call.1} parent=1 // pred_check_branch
      %37 = sbr.rel (0) target = $region21
    $region20: #{tpu_custom_call.1} parent=1 // pred_region
      %38 = dma.done [#allocation3], 768
    $region21: #{tpu_custom_call.1} parent=1 // pred_fallthru
      _
    %p39 = scmp.eq.s32.totalorder 0, 0
    // Predicated region
    $region22: #{tpu_custom_call.1} parent=1 // pred_check
      %p40 = pneg %p39
    $region23: #{tpu_custom_call.1} parent=1 // pred_check_branch
      %42 = sbr.rel (%p40) target = $region25
    $region24: #{tpu_custom_call.1} parent=1 // pred_region
      %43 = vst [vmem:[#allocation6] sm:$0x1] 0.0
      %44 = vst [vmem:[#allocation8] sm:$0x1] 0.0
      %vm45 = vcmask 24576
      %46 = vst.msk [vmem:[#allocation9] sm:$0x1] %vm45, 0.0
      %47 = vst.msk [vmem:[#allocation11] sm:$0x1] %vm45, 0.0
    $region25: #{tpu_custom_call.1} parent=1 // pred_fallthru
      _
    %v48 = vld [vmem:[%s0] sm:$0xff]
    %v49 = vld [vmem:[#allocation2] sm:$0xff]
    %v50 = vld [vmem:[#allocation2 + $0x8] sm:$0xff]
    %v51 = vld [vmem:[#allocation2 + $0x10] sm:$0xff]
    %v52 = vld [vmem:[#allocation2 + $0x18] sm:$0xff]
    %v53 = vld [vmem:[#allocation2 + $0x20] sm:$0xff]
    %v54 = vld [vmem:[#allocation2 + $0x28] sm:$0xff]
    %v55 = vld [vmem:[%s3] sm:$0x1]
    %v57 = vlaneseq
    %v58 = vshrl.u32 %v57, 7
    %v59 = vsub.s32 0, %v58
    %v60 = vrot.slane %v55, %v59
    %vm62 = vcmask 392192
    %v64 = vsel %vm62, %v48, 0
    %66 = vmatprep.subr.mxu0 0.0
    %67 = vmatpush1.msra.mxu0 0.0
    %68 = vmatprep.subr.mxu0 0.0
    %69 = vmatpush1.msra.mxu0 0.0
    %70 = vmatprep.subr.mxu0 0.0
    %71 = vmatpush1.msra.mxu0 0.0
    %72 = vmatprep.subr.mxu0 0.0
    %73 = vmatpush1.msra.mxu0 0.0
    %74 = vmatprep.subr.mxu0 0.0
    %75 = vmatpush1.msra.mxu0 0.0
    %76 = vmatprep.subr.mxu0 0.0
    %77 = vmatpush1.msra.mxu0 0.0
    %78 = vmatprep.subr.mxu0 0.0
    %79 = vmatpush1.msra.mxu0 0.0
    %80 = vmatprep.subr.mxu0 0.0
    %81 = vmatpush1.msra.mxu0 0.0
    %82 = vmatprep.subr.mxu0 0.0
    %83 = vmatpush1.msra.mxu0 0.0
    %84 = vmatprep.subr.mxu0 0.0
    %85 = vmatpush1.msra.mxu0 0.0
    %86 = vmatprep.subr.mxu0 0.0
    %87 = vmatpush1.msra.mxu0 %v54
    %88 = vmatprep.subr.mxu0 0.0
    %89 = vmatpush1.msra.mxu0 %v53
    %90 = vmatprep.subr.mxu0 0.0
    %91 = vmatpush1.msra.mxu0 %v52
    %92 = vmatprep.subr.mxu0 0.0
    %93 = vmatpush1.msra.mxu0 %v51
    %94 = vmatprep.subr.mxu0 0.0
    %95 = vmatpush1.msra.mxu0 %v50
    %96 = vmatprep.subr.mxu0 0.0
    %97 = vmatpush1.msra.mxu0 %v49
    %98 = vmatprep.subr.mxu0 0.0
    %99 = vmatpush2.msra.mxu0 0.0
    %100 = vmatprep.subr.mxu0 0.0
    %101 = vmatpush2.msra.mxu0 0.0
    %102 = vmatprep.subr.mxu0 0.0
    %103 = vmatpush2.msra.mxu0 0.0
    %104 = vmatprep.subr.mxu0 0.0
    %105 = vmatpush2.msra.mxu0 0.0
    %106 = vmatprep.subr.mxu0 0.0
    %107 = vmatpush2.msra.mxu0 0.0
    %108 = vmatprep.subr.mxu0 0.0
    %109 = vmatpush2.msra.mxu0 0.0
    %110 = vmatprep.subr.mxu0 0.0
    %111 = vmatpush2.msra.mxu0 0.0
    %112 = vmatprep.subr.mxu0 0.0
    %113 = vmatpush2.msra.mxu0 0.0
    %114 = vmatprep.subr.mxu0 0.0
    %115 = vmatpush2.msra.mxu0 0.0
    %116 = vmatprep.subr.mxu0 0.0
    %117 = vmatpush2.msra.mxu0 0.0
    %118 = vmatprep.subr.mxu0 0.0
    %119 = vmatpush2.msra.mxu0 0.0
    %120 = vmatprep.subr.mxu0 0.0
    %121 = vmatpush2.msra.mxu0 0.0
    %122 = vmatprep.subr.mxu0 0.0
    %123 = vmatpush2.msra.mxu0 0.0
    %124 = vmatprep.subr.mxu0 0.0
    %125 = vmatpush2.msra.mxu0 0.0
    %126 = vmatprep.subr.mxu0 0.0
    %127 = vmatpush2.msra.mxu0 0.0
    %128 = vmatprep.subr.mxu0 0.0
    %129 = vmatpush2.msra.mxu0 0.0
    %130 = vmatprep.mubr.f32.mxu0 0.0
    %131 = vmatmul.mubr.f32.gmra.mxu0 %v64
    %v132 = vpop.f32.mrf.mxu0
    %v133 = vadd.f32 %v60, %v132
    %v134 = vpop.f32.mrf.mxu0
    %135 = vdwg.mxu0
    %v136 = vmax.f32 %v133, 0.0
    %137 = vst [vmem:[#allocation5] sm:$0xff] %v136
    %v138 = vld [vmem:[%s1] sm:$0xff]
    %v139 = vld [vmem:[#allocation6] sm:$0x1]
    %v140 = vrot.slane %v136, 4
    %v141 = vadd.f32 %v136, %v140
    %v142 = vrot.slane %v141, 2
    %v143 = vadd.f32 %v141, %v142
    %v144 = vrot.slane %v143, 1
    %v145 = vadd.f32 %v143, %v144
    %v146 = vadd.f32 %v139, %v145
    %147 = vst [vmem:[#allocation6] sm:$0x1] %v146
    %v148 = vld [vmem:[#allocation8] sm:$0x1]
    %v149 = vmul.f32 %v136, %v136
    %v150 = vrot.slane %v149, 4
    %v151 = vadd.f32 %v149, %v150
    %v152 = vrot.slane %v151, 2
    %v153 = vadd.f32 %v151, %v152
    %v154 = vrot.slane %v153, 1
    %v155 = vadd.f32 %v153, %v154
    %v156 = vadd.f32 %v148, %v155
    %157 = vst [vmem:[#allocation8] sm:$0x1] %v156
    %v158 = vld [vmem:[#allocation9] sm:$0x1]
    %vm159 = vcmask 31744
    %v160 = vsel %vm159, %v138, 0.0
    %v161 = vrot.slane %v160, 4
    %v162 = vadd.f32 %v160, %v161
    %v163 = vrot.slane %v162, 2
    %v164 = vadd.f32 %v162, %v163
    %v165 = vrot.slane %v164, 1
    %v166 = vadd.f32 %v164, %v165
    %v167 = vadd.f32 %v158, %v166
    %vm168 = vcmask 24576
    %169 = vst.msk [vmem:[#allocation9] sm:$0x1] %vm168, %v167
    %v170 = vld [vmem:[#allocation11] sm:$0x1]
    %v171 = vmul.f32 %v138, %v138
    %v172 = vsel %vm159, %v171, 0.0
    %v173 = vrot.slane %v172, 4
    %v174 = vadd.f32 %v172, %v173
    %v175 = vrot.slane %v174, 2
    %v176 = vadd.f32 %v174, %v175
    %v177 = vrot.slane %v176, 1
    %v178 = vadd.f32 %v176, %v177
    %v179 = vadd.f32 %v170, %v178
    %180 = vst.msk [vmem:[#allocation11] sm:$0x1] %vm168, %v179
    // Predicated region
    $region26: #{tpu_custom_call.1} parent=1 // pred_check
      _
    $region27: #{tpu_custom_call.1} parent=1 // pred_check_branch
      %182 = sbr.rel (0) target = $region29
    $region28: #{tpu_custom_call.1} parent=1 // pred_region
      %s184 = ssub.s32 128, 128
      %185 = vsyncadd [#allocation4], %s184
      %s187 = sshll.u32 [#allocation5], 4
      %s188 = int_to_ptr.vmem [resolvable:$true] %s187
      %190 = dma.vmem_to_hbm [thread:$0]  %s188, 128, %s4, [#allocation4]
    $region29: #{tpu_custom_call.1} parent=1 // pred_fallthru
      _
    // Predicated region
    $region30: #{tpu_custom_call.1} parent=1 // pred_check
      _
    $region31: #{tpu_custom_call.1} parent=1 // pred_check_branch
      %192 = sbr.rel (0) target = $region33
    $region32: #{tpu_custom_call.1} parent=1 // pred_region
      %s194 = ssub.s32 16, 16
      %195 = vsyncadd [#allocation7], %s194
      %s197 = sshll.u32 [#allocation6], 4
      %s198 = int_to_ptr.vmem [resolvable:$true] %s197
      %200 = dma.vmem_to_hbm [thread:$0]  %s198, 16, %s5, [#allocation7]
    $region33: #{tpu_custom_call.1} parent=1 // pred_fallthru
      _
    // Predicated region
    $region34: #{tpu_custom_call.1} parent=1 // pred_check
      _
    $region35: #{tpu_custom_call.1} parent=1 // pred_check_branch
      %202 = sbr.rel (0) target = $region37
    $region36: #{tpu_custom_call.1} parent=1 // pred_region
      %s204 = ssub.s32 16, 16
      %205 = vsyncadd [#allocation7], %s204
      %s207 = sshll.u32 [#allocation8], 4
      %s208 = int_to_ptr.vmem [resolvable:$true] %s207
      %210 = dma.vmem_to_hbm [thread:$0]  %s208, 16, %s6, [#allocation7]
    $region37: #{tpu_custom_call.1} parent=1 // pred_fallthru
      _
    // Predicated region
    $region38: #{tpu_custom_call.1} parent=1 // pred_check
      _
    $region39: #{tpu_custom_call.1} parent=1 // pred_check_branch
      %212 = sbr.rel (0) target = $region41
    $region40: #{tpu_custom_call.1} parent=1 // pred_region
      %s214 = ssub.s32 16, 16
      %215 = vsyncadd [#allocation10], %s214
      %s217 = sshll.u32 [#allocation9], 4
      %s218 = int_to_ptr.vmem [resolvable:$true] %s217
      %220 = dma.vmem_to_hbm [thread:$0]  %s218, 16, %s7, [#allocation10]
    $region41: #{tpu_custom_call.1} parent=1 // pred_fallthru
      _
    // Predicated region
    $region42: #{tpu_custom_call.1} parent=1 // pred_check
      _
    $region43: #{tpu_custom_call.1} parent=1 // pred_check_branch
      %222 = sbr.rel (0) target = $region45
    $region44: #{tpu_custom_call.1} parent=1 // pred_region
      %s224 = ssub.s32 16, 16
      %225 = vsyncadd [#allocation10], %s224
      %s227 = sshll.u32 [#allocation11], 4
      %s228 = int_to_ptr.vmem [resolvable:$true] %s227
      %230 = dma.vmem_to_hbm [thread:$0]  %s228, 16, %s8, [#allocation10]
    $region45: #{tpu_custom_call.1} parent=1 // pred_fallthru
      _
    // Predicated region
    $region46: #{tpu_custom_call.1} parent=1 // pred_check
      _
    $region47: #{tpu_custom_call.1} parent=1 // pred_check_branch
      %232 = sbr.rel (0) target = $region49
    $region48: #{tpu_custom_call.1} parent=1 // pred_region
      %233 = dma.done [#allocation4], 128
    $region49: #{tpu_custom_call.1} parent=1 // pred_fallthru
      _
    // Predicated region
    $region50: #{tpu_custom_call.1} parent=1 // pred_check
      _
    $region51: #{tpu_custom_call.1} parent=1 // pred_check_branch
      %235 = sbr.rel (0) target = $region53
    $region52: #{tpu_custom_call.1} parent=1 // pred_region
      %236 = dma.done [#allocation7], 16
    $region53: #{tpu_custom_call.1} parent=1 // pred_fallthru
      _
    // Predicated region
    $region54: #{tpu_custom_call.1} parent=1 // pred_check
      _
    $region55: #{tpu_custom_call.1} parent=1 // pred_check_branch
      %238 = sbr.rel (0) target = $region57
    $region56: #{tpu_custom_call.1} parent=1 // pred_region
      %239 = dma.done [#allocation7], 16
    $region57: #{tpu_custom_call.1} parent=1 // pred_fallthru
      _
    // Predicated region
    $region58: #{tpu_custom_call.1} parent=1 // pred_check
      _
    $region59: #{tpu_custom_call.1} parent=1 // pred_check_branch
      %241 = sbr.rel (0) target = $region61
    $region60: #{tpu_custom_call.1} parent=1 // pred_region
      %242 = dma.done [#allocation10], 16
    $region61: #{tpu_custom_call.1} parent=1 // pred_fallthru
      _
    // Predicated region
    $region62: #{tpu_custom_call.1} parent=1 // pred_check
      _
    $region63: #{tpu_custom_call.1} parent=1 // pred_check_branch
      %244 = sbr.rel (0) target = $region65
    $region64: #{tpu_custom_call.1} parent=1 // pred_region
      %245 = dma.done [#allocation10], 16
    $region65: #{tpu_custom_call.1} parent=1 // pred_fallthru
      _
    %246 = vsyncpa [#allocation3], 1
    %247 = vsyncpa [#allocation4], 1
    %248 = vsyncpa [#allocation7], 1
    %249 = vsyncpa [#allocation10], 1

</llo_original>
